<compile_context>
chip_gen: v7x
topology: tpu7x:2x2x1
jax: 0.10.0
libtpu: 0.0.40
codegen_flags: <defaults>
</compile_context>

<pallas_src>
import jax
import jax.numpy as jnp
from jax.experimental import pallas as pl
from jax.experimental.pallas import tpu as pltpu


# ---------------------------------------------------------------------------
# Kernels
# ---------------------------------------------------------------------------

def _hamilton_kernel_acc(x_ref, w_ref, b_ref, o_ref, acc_ref):
    """Lane-dense matmul against packed W_H, accumulated over the K grid axis."""
    k = pl.program_id(2)

    @pl.when(k == 0)
    def _():
        acc_ref[...] = jnp.zeros_like(acc_ref)

    acc_ref[...] += jnp.dot(x_ref[...], w_ref[...],
                            preferred_element_type=jnp.float32)

    @pl.when(k == pl.num_programs(2) - 1)
    def _():
        o_ref[...] = (acc_ref[...] + b_ref[...]).astype(o_ref.dtype)


def _hamilton_kernel_noacc(x_ref, w_ref, b_ref, o_ref):
    """Single-K-step fast path: no scratch accumulator, no extra copies."""
    o_ref[...] = (jnp.dot(x_ref[...], w_ref[...],
                          preferred_element_type=jnp.float32)
                  + b_ref[...]).astype(o_ref.dtype)


def _component_sums(x_ref, w_ref):
    """Quaternion (Hamilton) product from per-component tiles.

    x_ref: (4, tm, tk) = [a;b;c;d],  w_ref: (4, tk, tn) = [Wa;Wb;Wc;Wd].
    Returns the four (tm, tn) f32 output-component partials.
    """
    a, b, c, d = x_ref[0], x_ref[1], x_ref[2], x_ref[3]
    wa, wb, wc, wd = w_ref[0], w_ref[1], w_ref[2], w_ref[3]
    dot = lambda u, v: jnp.dot(u, v, preferred_element_type=jnp.float32)
    oa = dot(a, wa) - dot(b, wb) - dot(c, wc) - dot(d, wd)
    ob = dot(a, wb) + dot(b, wa) + dot(c, wd) - dot(d, wc)
    oc = dot(a, wc) - dot(b, wd) + dot(c, wa) + dot(d, wb)
    od = dot(a, wd) + dot(b, wc) - dot(c, wb) + dot(d, wa)
    return oa, ob, oc, od


def _component_kernel_acc(x_ref, w_ref, b_ref, o_ref, acc_ref):
    k = pl.program_id(2)

    @pl.when(k == 0)
    def _():
        acc_ref[...] = jnp.zeros_like(acc_ref)

    oa, ob, oc, od = _component_sums(x_ref, w_ref)
    acc_ref[0] += oa
    acc_ref[1] += ob
    acc_ref[2] += oc
    acc_ref[3] += od

    @pl.when(k == pl.num_programs(2) - 1)
    def _():
        o_ref[...] = (acc_ref[...] + b_ref[...]).astype(o_ref.dtype)


def _component_kernel_noacc(x_ref, w_ref, b_ref, o_ref):
    oa, ob, oc, od = _component_sums(x_ref, w_ref)
    o_ref[0] = (oa + b_ref[0]).astype(o_ref.dtype)
    o_ref[1] = (ob + b_ref[1]).astype(o_ref.dtype)
    o_ref[2] = (oc + b_ref[2]).astype(o_ref.dtype)
    o_ref[3] = (od + b_ref[3]).astype(o_ref.dtype)


# ---------------------------------------------------------------------------
# Tiling / padding helpers
# ---------------------------------------------------------------------------

def _round_up(x, m):
    return ((x + m - 1) // m) * m


def _plan_dim(dim, cap, *, tile_align=256, pad_align=1):
    """Return (padded_dim, tile).

    dim <= cap  -> one full-extent block (optionally rounded up to pad_align,
                   used to force lane-dense (multiple-of-128) output widths).
    dim  > cap  -> pad dim to a multiple of tile_align and pick the largest
                   tile_align-multiple <= cap that divides the padded dim
                   (never a full-extent block: avoids scoped-VMEM blowups and
                   non-128-aligned lane extents).
    """
    if dim <= cap:
        p = _round_up(dim, pad_align)
        return p, p
    p = _round_up(dim, tile_align)
    tile = tile_align
    for t in range(tile_align, cap + 1, tile_align):
        if p % t == 0:
            tile = t
    return p, tile


def _pad_to(arr, axis, new_size):
    pad = new_size - arr.shape[axis]
    if pad == 0:
        return arr
    widths = [(0, 0)] * arr.ndim
    widths[axis] = (0, pad)
    return jnp.pad(arr, widths)


def _vmem_limit(estimate_bytes):
    # Comfortable headroom, but never above the v7x physical 64 MiB.
    return int(min(64 << 20, max(32 << 20, estimate_bytes * 5 // 4)))


# ---------------------------------------------------------------------------
# Parameter preparation (hoisted out of the per-forward path)
# ---------------------------------------------------------------------------

def prepare_params(Wa, Wb, Wc, Wd, bias, *, mode="hamilton",
                   compute_dtype=None, tn_cap=1024, tk_cap=1024):
    """Pack / cast / pad the weights ONCE (do this at module init / param
    update time, not inside the forward pass)."""
    in_q, out_q = Wa.shape
    wdt = compute_dtype if compute_dtype is not None else Wa.dtype

    if mode == "hamilton":
        # W_H = [[ Wa,  Wb,  Wc,  Wd],
        #        [-Wb,  Wa, -Wd,  Wc],
        #        [-Wc,  Wd,  Wa, -Wb],
        #        [-Wd, -Wc,  Wb,  Wa]]   (K = 4*in_q, N = 4*out_q)
        W = jnp.block([[Wa, Wb, Wc, Wd],
                       [-Wb, Wa, -Wd, Wc],
                       [-Wc, Wd, Wa, -Wb],
                       [-Wd, -Wc, Wb, Wa]]).astype(wdt)
        K, N = W.shape
        Kp, tk = _plan_dim(K, tk_cap)
        Np, tn = _plan_dim(N, tn_cap, pad_align=128)   # lane-dense output slab
        W = _pad_to(_pad_to(W, 0, Kp), 1, Np)
        b2 = _pad_to(bias.reshape(1, N).astype(jnp.float32), 1, Np)
        return dict(mode=mode, W=W, bias=b2, in_q=in_q, out_q=out_q,
                    K=K, N=N, Kp=Kp, Np=Np, tk=tk, tn=tn, compute_dtype=wdt)

    if mode == "components":
        Ws = jnp.stack([Wa, Wb, Wc, Wd], axis=0).astype(wdt)   # (4, in_q, out_q)
        Kp, tk = _plan_dim(in_q, tk_cap)
        # TODO(synk): optionally pad out_q to a multiple of 128 for lane-dense
        # stores when out_q is small (trades 0-padded weight bytes for it).
        Np, tn = _plan_dim(out_q, tn_cap)
        Ws = _pad_to(_pad_to(Ws, 1, Kp), 2, Np)
        b4 = _pad_to(bias.reshape(4, 1, out_q).astype(jnp.float32), 2, Np)
        return dict(mode=mode, W=Ws, bias=b4, in_q=in_q, out_q=out_q,
                    Kp=Kp, Np=Np, tk=tk, tn=tn, compute_dtype=wdt)

    raise ValueError(f"unknown mode: {mode}")


# ---------------------------------------------------------------------------
# Forward passes
# ---------------------------------------------------------------------------

def apply_hamilton(x, params, *, tm_cap=512):
    """Compute-bound path: x @ W_H (+ bias), one lane-dense matmul per step."""
    M, K = x.shape
    assert K == 4 * params["in_q"]
    out_dtype = x.dtype
    cdt = params["compute_dtype"]
    Kp, Np, tk, tn = params["Kp"], params["Np"], params["tk"], params["tn"]
    N = params["N"]

    Mp, tm = _plan_dim(M, tm_cap)
    xk = _pad_to(_pad_to(x.astype(cdt), 1, Kp), 0, Mp)

    # v7x dual-TC nudge: avoid a degenerate single parallel block when we can
    # cheaply split N (tn stays a multiple of 128 and still divides Np).
    if (Mp // tm) * (Np // tn) == 1 and tn >= 256 and (tn // 2) % 128 == 0:
        tn //= 2

    grid = (Mp // tm, Np // tn, Kp // tk)
    use_acc = grid[2] > 1

    isz = jnp.dtype(cdt).itemsize
    osz = jnp.dtype(out_dtype).itemsize
    vmem_est = (2 * (tm * tk + tk * tn) * isz + 2 * tn * 4
                + 2 * tm * tn * osz + (tm * tn * 4 if use_acc else 0))
    cost = pl.CostEstimate(
        flops=2 * Mp * Np * Kp,
        transcendentals=0,
        bytes_accessed=Mp * Kp * isz + Kp * Np * isz + Np * 4 + Mp * Np * osz)

    kernel = _hamilton_kernel_acc if use_acc else _hamilton_kernel_noacc
    scratch = [pltpu.VMEM((tm, tn), jnp.float32)] if use_acc else []

    out = pl.pallas_call(
        kernel,
        out_shape=jax.ShapeDtypeStruct((Mp, Np), out_dtype),
        grid_spec=pltpu.PrefetchScalarGridSpec(
            num_scalar_prefetch=0,
            grid=grid,
            in_specs=[
                pl.BlockSpec((tm, tk), lambda i, j, k: (i, k)),   # x tile
                pl.BlockSpec((tk, tn), lambda i, j, k: (k, j)),   # W_H tile
                pl.BlockSpec((1, tn), lambda i, j, k: (0, j)),    # bias row
            ],
            out_specs=pl.BlockSpec((tm, tn), lambda i, j, k: (i, j)),
            scratch_shapes=scratch,
        ),
        compiler_params=pltpu.CompilerParams(
            dimension_semantics=("parallel", "parallel", "arbitrary"),
            vmem_limit_bytes=_vmem_limit(vmem_est)),
        cost_estimate=cost,
    )(xk, params["W"], params["bias"])

    return out[:M, :N]


def apply_components(x, params, *, tm_cap=512):
    """Weight-bound (small batch) path: stream only (4, in_q, out_q) weights."""
    M, K = x.shape
    in_q, out_q = params["in_q"], params["out_q"]
    assert K == 4 * in_q
    out_dtype = x.dtype
    cdt = params["compute_dtype"]
    Kp, Np, tk, tn = params["Kp"], params["Np"], params["tk"], params["tn"]

    Mp, tm = _plan_dim(M, tm_cap)
    # (M, 4*in_q) [a|b|c|d]  ->  (4, M, in_q): small-M layout plumbing.
    x4 = x.reshape(M, 4, in_q).transpose(1, 0, 2).astype(cdt)
    x4 = _pad_to(_pad_to(x4, 2, Kp), 1, Mp)

    grid = (Mp // tm, Np // tn, Kp // tk)
    use_acc = grid[2] > 1

    isz = jnp.dtype(cdt).itemsize
    osz = jnp.dtype(out_dtype).itemsize
    vmem_est = (2 * 4 * (tm * tk + tk * tn) * isz + 2 * 4 * tn * 4
                + 2 * 4 * tm * tn * osz + (4 * tm * tn * 4 if use_acc else 0))
    cost = pl.CostEstimate(
        flops=2 * Mp * (4 * Np) * (4 * Kp),
        transcendentals=0,
        bytes_accessed=(4 * Mp * Kp * isz + 4 * Kp * Np * isz
                        + 4 * Np * 4 + 4 * Mp * Np * osz))

    kernel = _component_kernel_acc if use_acc else _component_kernel_noacc
    scratch = [pltpu.VMEM((4, tm, tn), jnp.float32)] if use_acc else []

    out4 = pl.pallas_call(
        kernel,
        out_shape=jax.ShapeDtypeStruct((4, Mp, Np), out_dtype),
        grid_spec=pltpu.PrefetchScalarGridSpec(
            num_scalar_prefetch=0,
            grid=grid,
            in_specs=[
                pl.BlockSpec((4, tm, tk), lambda i, j, k: (0, i, k)),  # a/b/c/d
                pl.BlockSpec((4, tk, tn), lambda i, j, k: (0, k, j)),  # Wa..Wd
                pl.BlockSpec((4, 1, tn), lambda i, j, k: (0, 0, j)),   # bias
            ],
            out_specs=pl.BlockSpec((4, tm, tn), lambda i, j, k: (0, i, j)),
            scratch_shapes=scratch,
        ),
        compiler_params=pltpu.CompilerParams(
            dimension_semantics=("parallel", "parallel", "arbitrary"),
            vmem_limit_bytes=_vmem_limit(vmem_est)),
        cost_estimate=cost,
    )(x4, params["W"], params["bias"])

    out4 = out4[:, :M, :out_q]                       # strip padding
    return out4.transpose(1, 0, 2).reshape(M, 4 * out_q)


def quaternion_linear(x, Wa, Wb, Wc, Wd, bias, *, mode="auto",
                      compute_dtype=None,
                      tm_cap=512, tn_cap=1024, tk_cap=1024):
    """One-shot convenience wrapper.

    NOTE: in a real model call prepare_params() once when the weights are set
    and reuse the packed params across forward passes (amortizes the
    pack/negate/pad HBM traffic); this wrapper re-prepares per call only so
    the demo stays self-contained.
    """
    M = x.shape[0]
    if mode == "auto":
        # Small batch => HBM-weight-bound => stream [Wa;Wb;Wc;Wd] (4x fewer
        # weight bytes).  Large batch => compute-bound => packed Hamilton W_H.
        mode = "components" if M <= 256 else "hamilton"
    params = prepare_params(Wa, Wb, Wc, Wd, bias, mode=mode,
                            compute_dtype=compute_dtype,
                            tn_cap=tn_cap, tk_cap=tk_cap)
    if mode == "hamilton":
        return apply_hamilton(x, params, tm_cap=tm_cap)
    return apply_components(x, params, tm_cap=tm_cap)


# ---------------------------------------------------------------------------
# Reference + demo
# ---------------------------------------------------------------------------

def xavier_uniform(key, shape, dtype=jnp.float32):
    fan_in, fan_out = shape
    bound = (6.0 / (fan_in + fan_out)) ** 0.5
    return jax.random.uniform(key, shape, dtype, minval=-bound, maxval=bound)


def reference(x, Wa, Wb, Wc, Wd, bias):
    in_q = Wa.shape[0]
    a = x[:, 0 * in_q:1 * in_q]
    b = x[:, 1 * in_q:2 * in_q]
    c = x[:, 2 * in_q:3 * in_q]
    d = x[:, 3 * in_q:4 * in_q]
    out_a = a @ Wa - b @ Wb - c @ Wc - d @ Wd
    out_b = a @ Wb + b @ Wa + c @ Wd - d @ Wc
    out_c = a @ Wc - b @ Wd + c @ Wa + d @ Wb
    out_d = a @ Wd + b @ Wc - c @ Wb + d @ Wa
    return jnp.concatenate([out_a, out_b, out_c, out_d], axis=1) + bias


if __name__ == "__main__":
    batch = 8
    in_features = 64
    out_features = 64
    in_q = in_features // 4
    out_q = out_features // 4

    key = jax.random.PRNGKey(0)
    kx, ka, kb, kc, kd, kbias = jax.random.split(key, 6)

    x = jax.random.normal(kx, (batch, in_features), dtype=jnp.float32)
    Wa = xavier_uniform(ka, (in_q, out_q))
    Wb = xavier_uniform(kb, (in_q, out_q))
    Wc = xavier_uniform(kc, (in_q, out_q))
    Wd = xavier_uniform(kd, (in_q, out_q))
    bias = 0.1 * jax.random.normal(kbias, (out_features,), dtype=jnp.float32)

    ref = reference(x, Wa, Wb, Wc, Wd, bias)

    # f32, packed-Hamilton (compute-bound) path.
    out_h = jax.block_until_ready(
        quaternion_linear(x, Wa, Wb, Wc, Wd, bias, mode="hamilton"))
    # f32, component (weight-bound small-batch) path.
    out_c = jax.block_until_ready(
        quaternion_linear(x, Wa, Wb, Wc, Wd, bias, mode="components"))
    # bf16 operands, f32 accumulation (throughput path), auto mode.
    out_b = jax.block_until_ready(
        quaternion_linear(x, Wa, Wb, Wc, Wd, bias, mode="auto",
                          compute_dtype=jnp.bfloat16))

    assert out_h.shape == (batch, out_features)
    assert out_c.shape == (batch, out_features)
    assert out_b.shape == (batch, out_features)
    assert jnp.allclose(out_h, ref, atol=1e-3, rtol=1e-4), "hamilton path mismatch"
    assert jnp.allclose(out_c, ref, atol=1e-3, rtol=1e-4), "component path mismatch"
    assert jnp.allclose(out_b, ref, atol=2e-1, rtol=5e-2), "bf16 path mismatch"

    print("KERNEL_OK")
</pallas_src>

<mosaic_0001>
module attributes {stable_mosaic.version = 11 : i64} {
  func.func @_hamilton_kernel_noacc(%arg0: i32, %arg1: i32, %arg2: i32, %arg3: memref<8x64xf32, #tpu.memory_space<vmem>>, %arg4: memref<64x128xf32, #tpu.memory_space<vmem>>, %arg5: memref<1x128xf32, #tpu.memory_space<vmem>>, %arg6: memref<8x128xf32, #tpu.memory_space<vmem>>) attributes {dimension_semantics = [#tpu.dimension_semantics<parallel>, #tpu.dimension_semantics<parallel>, #tpu.dimension_semantics<arbitrary>], iteration_bounds = array<i64: 1, 1, 1>, scalar_prefetch = 0 : i64, scratch_operands = 0 : i64, tpu.core_type = #tpu.core_type<tc>, window_params = [{transform_indices = @transform_0, window_bounds = array<i64: 8, 64>}, {transform_indices = @transform_1, window_bounds = array<i64: 64, 128>}, {transform_indices = @transform_2, window_bounds = array<i64: 1, 128>}, {transform_indices = @transform_3, window_bounds = array<i64: 8, 128>}]} {
    %c0 = arith.constant 0 : index
    %c0_0 = arith.constant 0 : index
    %0 = vector.load %arg3[%c0, %c0_0] : memref<8x64xf32, #tpu.memory_space<vmem>>, vector<8x64xf32>
    %c0_1 = arith.constant 0 : index
    %c0_2 = arith.constant 0 : index
    %1 = vector.load %arg4[%c0_1, %c0_2] : memref<64x128xf32, #tpu.memory_space<vmem>>, vector<64x128xf32>
    %cst = arith.constant dense<0.000000e+00> : vector<8x128xf32>
    %2 = tpu.matmul %0, %1, %cst {dimension_numbers = #tpu.dot_dimension_numbers<[1], [0], [0], [1], [0, 0, 1, 1], [], []>} : vector<8x64xf32>, vector<64x128xf32>, vector<8x128xf32> -> vector<8x128xf32>
    %c0_3 = arith.constant 0 : index
    %c0_4 = arith.constant 0 : index
    %3 = vector.load %arg5[%c0_3, %c0_4] : memref<1x128xf32, #tpu.memory_space<vmem>>, vector<1x128xf32>
    %4 = vector.broadcast %3 : vector<1x128xf32> to vector<8x128xf32>
    %5 = arith.addf %2, %4 : vector<8x128xf32>
    %c0_5 = arith.constant 0 : index
    %c0_6 = arith.constant 0 : index
    %6 = vector.load %arg6[%c0_5, %c0_6] : memref<8x128xf32, #tpu.memory_space<vmem>>, vector<8x128xf32>
    tpu.vector_store %arg6[%c0_5, %c0_6], %5 {strides = array<i32>} : memref<8x128xf32, #tpu.memory_space<vmem>>, vector<8x128xf32>,
    return
  }
  func.func @transform_0(%arg0: i32, %arg1: i32, %arg2: i32) -> (i32, i32) {
    %c0_i32 = arith.constant 0 : i32
    return %arg0, %arg2 : i32, i32
  }
  func.func @transform_1(%arg0: i32, %arg1: i32, %arg2: i32) -> (i32, i32) {
    %c0_i32 = arith.constant 0 : i32
    return %arg2, %arg1 : i32, i32
  }
  func.func @transform_2(%arg0: i32, %arg1: i32, %arg2: i32) -> (i32, i32) {
    %c0_i32 = arith.constant 0 : i32
    %c0_i32_0 = arith.constant 0 : i32
    return %c0_i32, %arg1 : i32, i32
  }
  func.func @transform_3(%arg0: i32, %arg1: i32, %arg2: i32) -> (i32, i32) {
    %c0_i32 = arith.constant 0 : i32
    return %arg0, %arg1 : i32, i32
  }
}

</mosaic_0001>

<llo_original>
// kernel: tpu_custom_call.1
$region0: #{tpu_custom_call.1}
  #allocation0 [shape = 'u32[]', space=smem, size = 0x4, offset = 0x4, fixed_abs, tag = 'smem constant byte address 0x4 - core index']
  #allocation1 [shape = 'u32[144,128]{1,0:T(1,128)}', space=vmem, size = 0x12000, scoped, tag = 'internal scratch']
  %s0 = inlined_call_operand.hbm [shape: f32[8,64], index: 0, kind: input, shape index: {}]
  %s1 = inlined_call_operand.hbm [shape: f32[64,128], index: 1, kind: input, shape index: {}]
  %s2 = inlined_call_operand.vmem [shape: f32[1,128], index: 2, kind: input, shape index: {}]
  %s3 = inlined_call_operand.hbm [shape: f32[8,128], index: 3, kind: output, shape index: {}]
  %s4 = sld [smem:[#allocation0]]
  $region30: #{tpu_custom_call.1} parent=0
    _
  %s6 = ssub.s32 1, %s4
  %s7 = scalar_select 0, %s6, %s4
  $region1: #{tpu_custom_call.1} parent=0
    #allocation2 [shape = 'u8[4096]{0}', space=vmem, size = 0x1000, scoped, tag = 'input window, operand 0, single buffered']
    #allocation3 [shape = 's32[1]{0}', space=sflag, size = 0x4, scoped, tag = 'scoped memory for tpu_custom_call.1']
    #allocation4 [shape = 's32[1]{0}', space=sflag, size = 0x4, scoped, tag = 'scoped memory for tpu_custom_call.1']
    #allocation5 [shape = 'u8[32768]{0}', space=vmem, size = 0x8000, scoped, tag = 'input window, operand 1, single buffered']
    #allocation6 [shape = 's32[1]{0}', space=sflag, size = 0x4, scoped, tag = 'scoped memory for tpu_custom_call.1']
    #allocation7 [shape = 'u8[4096]{0}', space=vmem, size = 0x1000, scoped, tag = 'output window, operand 0, single buffered']
    %8 = vsyncpa [#allocation3], 0
    %9 = vsyncpa [#allocation6], 0
    %10 = vsyncpa [#allocation4], 0
    // Predicated region
    $region2: #{tpu_custom_call.1} parent=1 // pred_check
      _
    $region3: #{tpu_custom_call.1} parent=1 // pred_check_branch
      %12 = sbr.rel (0) target = $region5
    $region4: #{tpu_custom_call.1} parent=1 // pred_region
      %s14 = ssub.s32 128, 128
      %15 = vsyncadd [#allocation3], %s14
      %s17 = sshll.u32 [#allocation2], 4
      %s18 = int_to_ptr.vmem [resolvable:$true] %s17
      %20 = dma.hbm_to_vmem [thread:$0]  %s0, 128, %s18, [#allocation3]
    $region5: #{tpu_custom_call.1} parent=1 // pred_fallthru
      _
    // Predicated region
    $region6: #{tpu_custom_call.1} parent=1 // pred_check
      _
    $region7: #{tpu_custom_call.1} parent=1 // pred_check_branch
      %22 = sbr.rel (0) target = $region9
    $region8: #{tpu_custom_call.1} parent=1 // pred_region
      %s24 = ssub.s32 1024, 1024
      %25 = vsyncadd [#allocation6], %s24
      %s26 = sshll.u32 [#allocation5], 4
      %s27 = int_to_ptr.vmem [resolvable:$true] %s26
      %32 = dma.hbm_to_vmem [thread:$0]  %s1, 1024, %s27, [#allocation6], 128, 128, 8
    $region9: #{tpu_custom_call.1} parent=1 // pred_fallthru
      _
    // Predicated region
    $region10: #{tpu_custom_call.1} parent=1 // pred_check
      _
    $region11: #{tpu_custom_call.1} parent=1 // pred_check_branch
      %34 = sbr.rel (0) target = $region13
    $region12: #{tpu_custom_call.1} parent=1 // pred_region
      _
    $region13: #{tpu_custom_call.1} parent=1 // pred_fallthru
      _
    // Predicated region
    $region14: #{tpu_custom_call.1} parent=1 // pred_check
      _
    $region15: #{tpu_custom_call.1} parent=1 // pred_check_branch
      %36 = sbr.rel (0) target = $region17
    $region16: #{tpu_custom_call.1} parent=1 // pred_region
      %37 = dma.done [#allocation3], 128
    $region17: #{tpu_custom_call.1} parent=1 // pred_fallthru
      _
    // Predicated region
    $region18: #{tpu_custom_call.1} parent=1 // pred_check
      _
    $region19: #{tpu_custom_call.1} parent=1 // pred_check_branch
      %39 = sbr.rel (0) target = $region21
    $region20: #{tpu_custom_call.1} parent=1 // pred_region
      %40 = dma.done [#allocation6], 1024
    $region21: #{tpu_custom_call.1} parent=1 // pred_fallthru
      _
    %v41 = vld [vmem:[#allocation2] sm:$0xff]
    %v42 = vld [vmem:[#allocation5] sm:$0xff]
    %v43 = vld [vmem:[#allocation5 + $0x8] sm:$0xff]
    %v44 = vld [vmem:[#allocation5 + $0x10] sm:$0xff]
    %v45 = vld [vmem:[#allocation5 + $0x18] sm:$0xff]
    %v46 = vld [vmem:[#allocation5 + $0x20] sm:$0xff]
    %v47 = vld [vmem:[#allocation5 + $0x28] sm:$0xff]
    %v48 = vld [vmem:[#allocation5 + $0x30] sm:$0xff]
    %v49 = vld [vmem:[#allocation5 + $0x38] sm:$0xff]
    %v50 = vld [vmem:[%s2] sm:$0x1]
    %v52 = vlaneseq
    %v53 = vshrl.u32 %v52, 7
    %v54 = vsub.s32 0, %v53
    %v55 = vrot.slane %v50, %v54
    %vm57 = vcmask 523264
    %v59 = vsel %vm57, %v41, 0
    %61 = vmatprep.subr.mxu0 0.0
    %62 = vmatpush1.msra.mxu0 %v42
    %63 = vmatprep.subr.mxu0 0.0
    %64 = vmatpush1.msra.mxu0 %v43
    %65 = vmatprep.subr.mxu0 0.0
    %66 = vmatpush1.msra.mxu0 %v44
    %67 = vmatprep.subr.mxu0 0.0
    %68 = vmatpush1.msra.mxu0 %v45
    %69 = vmatprep.subr.mxu0 0.0
    %70 = vmatpush1.msra.mxu0 %v46
    %71 = vmatprep.subr.mxu0 0.0
    %72 = vmatpush1.msra.mxu0 %v47
    %73 = vmatprep.subr.mxu0 0.0
    %74 = vmatpush1.msra.mxu0 %v48
    %75 = vmatprep.subr.mxu0 0.0
    %76 = vmatpush1.msra.mxu0 %v49
    %77 = vmatprep.subr.mxu0 0.0
    %78 = vmatpush1.msra.mxu0 0.0
    %79 = vmatprep.subr.mxu0 0.0
    %80 = vmatpush1.msra.mxu0 0.0
    %81 = vmatprep.subr.mxu0 0.0
    %82 = vmatpush1.msra.mxu0 0.0
    %83 = vmatprep.subr.mxu0 0.0
    %84 = vmatpush1.msra.mxu0 0.0
    %85 = vmatprep.subr.mxu0 0.0
    %86 = vmatpush1.msra.mxu0 0.0
    %87 = vmatprep.subr.mxu0 0.0
    %88 = vmatpush1.msra.mxu0 0.0
    %89 = vmatprep.subr.mxu0 0.0
    %90 = vmatpush1.msra.mxu0 0.0
    %91 = vmatprep.subr.mxu0 0.0
    %92 = vmatpush1.msra.mxu0 0.0
    %93 = vmatprep.subr.mxu0 0.0
    %94 = vmatpush1.msra.mxu0 0.0
    %95 = vmatprep.subr.mxu0 0.0
    %96 = vmatpush1.msra.mxu0 0.0
    %97 = vmatprep.subr.mxu0 0.0
    %98 = vmatpush1.msra.mxu0 0.0
    %99 = vmatprep.subr.mxu0 0.0
    %100 = vmatpush1.msra.mxu0 0.0
    %101 = vmatprep.subr.mxu0 0.0
    %102 = vmatpush1.msra.mxu0 0.0
    %103 = vmatprep.subr.mxu0 0.0
    %104 = vmatpush1.msra.mxu0 0.0
    %105 = vmatprep.subr.mxu0 0.0
    %106 = vmatpush1.msra.mxu0 0.0
    %107 = vmatprep.subr.mxu0 0.0
    %108 = vmatpush1.msra.mxu0 0.0
    %109 = vmatprep.subr.mxu0 0.0
    %110 = vmatpush1.msra.mxu0 0.0
    %111 = vmatprep.subr.mxu0 0.0
    %112 = vmatpush1.msra.mxu0 0.0
    %113 = vmatprep.subr.mxu0 0.0
    %114 = vmatpush1.msra.mxu0 0.0
    %115 = vmatprep.subr.mxu0 0.0
    %116 = vmatpush1.msra.mxu0 0.0
    %117 = vmatprep.subr.mxu0 0.0
    %118 = vmatpush1.msra.mxu0 0.0
    %119 = vmatprep.subr.mxu0 0.0
    %120 = vmatpush1.msra.mxu0 0.0
    %121 = vmatprep.subr.mxu0 0.0
    %122 = vmatpush1.msra.mxu0 0.0
    %123 = vmatprep.subr.mxu0 0.0
    %124 = vmatpush1.msra.mxu0 0.0
    %125 = vmatprep.mubr.f32.mxu0 0.0
    %126 = vmatmul.mubr.f32.gmra.mrb[0].mxu0 %v59
    %v127 = vpop.f32.mrb[0].mxu0
    %v128 = vadd.f32 %v55, %v127
    %v129 = vpop.f32.mrb[0].mxu0
    %130 = vdwg.mxu0
    %131 = vst [vmem:[#allocation7] sm:$0xff] %v128
    // Predicated region
    $region22: #{tpu_custom_call.1} parent=1 // pred_check
      _
    $region23: #{tpu_custom_call.1} parent=1 // pred_check_branch
      %133 = sbr.rel (0) target = $region25
    $region24: #{tpu_custom_call.1} parent=1 // pred_region
      %s135 = ssub.s32 128, 128
      %136 = vsyncadd [#allocation4], %s135
      %s138 = sshll.u32 [#allocation7], 4
      %s139 = int_to_ptr.vmem [resolvable:$true] %s138
      %141 = dma.vmem_to_hbm [thread:$0]  %s139, 128, %s3, [#allocation4]
    $region25: #{tpu_custom_call.1} parent=1 // pred_fallthru
      _
    // Predicated region
    $region26: #{tpu_custom_call.1} parent=1 // pred_check
      _
    $region27: #{tpu_custom_call.1} parent=1 // pred_check_branch
      %143 = sbr.rel (0) target = $region29
    $region28: #{tpu_custom_call.1} parent=1 // pred_region
      %144 = dma.done [#allocation4], 128
    $region29: #{tpu_custom_call.1} parent=1 // pred_fallthru
      _
    %145 = vsyncpa [#allocation3], 1
    %146 = vsyncpa [#allocation6], 1
    %147 = vsyncpa [#allocation4], 1

</llo_original>
